<compile_context>
chip_gen: v5e
topology: v5e:2x2
jax: 0.10.0
libtpu: 0.0.40
codegen_flags: <defaults>
</compile_context>

<pallas_src>
import numpy as np
import jax
import jax.numpy as jnp
from jax import lax
from jax.experimental import pallas as pl
from jax.experimental.pallas import tpu as pltpu


# <= ~48 MiB keeps the same config safe on v7x (64 MiB physical VMEM) while still
# allowing much larger tiles than the 16/32 MiB scoped defaults.
_VMEM_LIMIT = 48 * 1024 * 1024


def _round_up(x, m):
    return ((x + m - 1) // m) * m


# ----------------------------- attention scores ------------------------------

def attention_scores(adj, x, w, b, *, tm=512, tk=2048):
    """tanh(A @ (X @ w) + b) -> (N,) f32 scores.

    adj:(N,N) streamed as given (pass bf16 from the producer to halve the dominant
    HBM stream; f32 also works), x:(N,F), w:(F,1), b:().  Accumulation and the
    score output stay f32 so top-k ordering is stable.  No jnp.pad copy of A: the
    grid uses cdiv and the ragged tail of the k (reduction) axis is masked
    in-kernel, so the only full-matrix HBM traffic is the kernel's single read.
    """
    N, F = x.shape

    # support = X @ w precomputed once (tiny XLA matmul) instead of re-deriving it
    # in-kernel nr/tm times per k tile; f32 + HIGHEST so the scores only inherit
    # the (optional) bf16 quantization of A.
    support = jnp.dot(x.astype(jnp.float32), w.astype(jnp.float32),
                      precision=lax.Precision.HIGHEST).reshape(1, N)
    b2 = jnp.reshape(b, (1, 1)).astype(jnp.float32)

    tm_e = min(tm, _round_up(N, 8))
    if N > 8 and pl.cdiv(N, tm_e) < 2:
        # keep >= 2 row tiles so the "parallel" axis feeds both v7x TensorCores
        tm_e = _round_up(pl.cdiv(N, 2), 8)
    tk_e = min(tk, _round_up(N, 128))
    n_groups = tk_e // 128

    grid = (pl.cdiv(N, tm_e), pl.cdiv(N, tk_e))

    def kernel(a_ref, s_ref, b_ref, o_ref, acc_ref):
        k = pl.program_id(1)

        @pl.when(k == 0)
        def _init():
            acc_ref[...] = jnp.zeros_like(acc_ref)

        # Ragged-tail mask: with no pre-pad, the OOB lanes of the last k tile hold
        # stale VMEM; mask the product (also kills any NaN garbage).
        col = k * tk_e + lax.broadcasted_iota(jnp.int32, (1, tk_e), 1)
        valid = col < N

        a = a_ref[...].astype(jnp.float32)            # (tm, tk)  bf16/f32 stream
        s = s_ref[...].astype(jnp.float32)            # (1,  tk)  support row
        prod = jnp.where(valid, a * s, 0.0)           # (tm, tk)  f32

        # Lane-group partial accumulation: per-step work is pure VPU adds on
        # vreg-aligned 128-lane slices; the cross-lane (XLU) reduce is deferred to
        # the finalize (one reduce per row tile instead of per (row, k) step).
        acc = acc_ref[...]
        for g in range(n_groups):
            acc = acc + prod[:, g * 128:(g + 1) * 128]
        acc_ref[...] = acc

        @pl.when(k == pl.num_programs(1) - 1)
        def _finalize():
            row = jnp.sum(acc_ref[...], axis=1, keepdims=True)
            o_ref[...] = jnp.tanh(row + b_ref[0, 0])

    out = pl.pallas_call(
        kernel,
        out_shape=jax.ShapeDtypeStruct((N, 1), jnp.float32),
        grid_spec=pltpu.PrefetchScalarGridSpec(
            num_scalar_prefetch=0,
            grid=grid,
            in_specs=[
                pl.BlockSpec((tm_e, tk_e), lambda i, k: (i, k)),    # A tile
                pl.BlockSpec((1, tk_e), lambda i, k: (0, k)),       # support row
                pl.BlockSpec(memory_space=pltpu.MemorySpace.SMEM),  # bias scalar
            ],
            out_specs=pl.BlockSpec((tm_e, 1), lambda i, k: (i, 0)),
            scratch_shapes=[pltpu.VMEM((tm_e, 128), jnp.float32)],
        ),
        compiler_params=pltpu.CompilerParams(
            dimension_semantics=("parallel", "arbitrary"),   # rows shard across TCs
            vmem_limit_bytes=_VMEM_LIMIT,
        ),
    )(adj, support, b2)
    return out[:, 0]


# ------------------------- pooled adjacency kernels --------------------------

def _degree_kernel(sub_ref, dinv_ref, acc_ref):
    """Row degree of the binarized pooled adjacency, then rsqrt (EUP)."""
    j = pl.program_id(1)

    @pl.when(j == 0)
    def _init():
        acc_ref[...] = jnp.zeros_like(acc_ref)

    a_hat = (sub_ref[...] != 0).astype(jnp.float32)       # pattern of A_sub + I
    acc_ref[...] += jnp.sum(a_hat, axis=1, keepdims=True)

    @pl.when(j == pl.num_programs(1) - 1)
    def _finalize():
        # real rows always have degree >= 1 (kept self loop); the max() only guards
        # zero-padded rows so they yield 1.0 instead of inf.
        dinv_ref[...] = lax.rsqrt(jnp.maximum(acc_ref[...], 1.0))


def _renorm_kernel(sub_ref, dcol_ref, drow_ref, o_ref):
    """L = binarize((A+I)_sub) * d^-0.5[row] * d^-0.5[col]  (one fused pass)."""
    a_hat = (sub_ref[...] != 0).astype(jnp.float32)
    o_ref[...] = a_hat * dcol_ref[...] * drow_ref[...]


def filter_adjacency_pallas(adj_norm, keep_idx, *, tr=512, tc=2048):
    """Pooled + renormalized adjacency: L_sub = D^-0.5 (A_sub + I) D^-0.5.

    The nonzero pattern of the already-normalized input adjacency is exactly A + I,
    so the gathered (K,K) block binarizes directly to A_sub + I.
    """
    K = int(keep_idx.shape[0])

    tr_e = min(tr, _round_up(K, 32))     # int8 sublane packing -> multiples of 32
    tc_e = min(tc, _round_up(K, 128))
    kr = _round_up(K, tr_e)
    kc = _round_up(K, tc_e)

    # TODO(synk): the data-dependent (K,K) row+column gather has no clean BlockSpec
    # equivalent; it is one fused XLA gather.  Binarize + pad at the gather so the
    # materialized sub is int8: 4x less HBM traffic than f32 for this write and for
    # the two kernel reads below (only the nonzero pattern is ever used).
    sub = (adj_norm[keep_idx[:, None], keep_idx[None, :]] != 0).astype(jnp.int8)
    sub_p = sub if (kr == K and kc == K) else jnp.pad(sub, ((0, kr - K), (0, kc - K)))
    grid = (kr // tr_e, kc // tc_e)

    # pass 1: binarize + row degree + rsqrt
    d_inv = pl.pallas_call(
        _degree_kernel,
        out_shape=jax.ShapeDtypeStruct((kr, 1), jnp.float32),
        grid_spec=pltpu.PrefetchScalarGridSpec(
            num_scalar_prefetch=0,
            grid=grid,
            in_specs=[pl.BlockSpec((tr_e, tc_e), lambda i, j: (i, j))],
            out_specs=pl.BlockSpec((tr_e, 1), lambda i, j: (i, 0)),
            scratch_shapes=[pltpu.VMEM((tr_e, 1), jnp.float32)],
        ),
        compiler_params=pltpu.CompilerParams(
            dimension_semantics=("parallel", "arbitrary"),
            vmem_limit_bytes=_VMEM_LIMIT,
        ),
    )(sub_p)

    # d^-0.5 as a lane-dense row for the column scaling (K floats, trivial in XLA)
    drow = jnp.pad(d_inv[:K, 0], (0, kc - K)).reshape(1, kc)

    # pass 2: outer scaling (binarize fused in; no intermediate A_hat matrix in HBM)
    # NOTE: when K*K int8 fits in VMEM this could be fused with pass 1 by keeping
    # sub resident in scratch; skipped to keep one portable (v7x 64 MiB) config.
    L = pl.pallas_call(
        _renorm_kernel,
        out_shape=jax.ShapeDtypeStruct((kr, kc), jnp.float32),
        grid_spec=pltpu.PrefetchScalarGridSpec(
            num_scalar_prefetch=0,
            grid=grid,
            in_specs=[
                pl.BlockSpec((tr_e, tc_e), lambda i, j: (i, j)),
                pl.BlockSpec((tr_e, 1), lambda i, j: (i, 0)),
                pl.BlockSpec((1, tc_e), lambda i, j: (0, j)),
            ],
            out_specs=pl.BlockSpec((tr_e, tc_e), lambda i, j: (i, j)),
        ),
        compiler_params=pltpu.CompilerParams(
            dimension_semantics=("parallel", "parallel"),
            vmem_limit_bytes=_VMEM_LIMIT,
        ),
    )(sub_p, d_inv, drow)
    return L[:K, :K]


# ------------------------------- JAX glue ----------------------------------

def _keep_counts(graph_sizes, keep_ratio):
    return [int(keep_ratio * n) for n in graph_sizes]


def top_rank_indices(attn_score, graph_indicator, graph_sizes, keep_ratio):
    """Kept node indices (ascending) via ONE global stable lexsort."""
    # TODO(synk): per-graph dynamic-size top-k has no clean Pallas equivalent; it is
    # one stable sort in XLA.
    keep_counts = _keep_counts(graph_sizes, keep_ratio)
    keep_sorted = np.concatenate(
        [np.arange(n) < k for n, k in zip(graph_sizes, keep_counts)])      # static
    kept_positions = np.nonzero(keep_sorted)[0]                            # static, size K
    # primary key: graph id (ascending); secondary: score (descending); stable.
    order = jnp.lexsort((-attn_score, graph_indicator))
    keep_idx = jnp.sort(order[kept_positions])     # restore original node order
    return keep_idx


class SelfAttentionPoolingPallas:
    def __init__(self, input_dim, keep_ratio, key):
        self.input_dim = input_dim
        self.keep_ratio = keep_ratio
        # GraphConvolution(input_dim, 1): kaiming_uniform_ (fan_in=1, gain=sqrt(2)
        # -> bound = sqrt(6)), bias zeros.
        bound = float(np.sqrt(2.0) * np.sqrt(3.0))
        self.weight = jax.random.uniform(key, (input_dim, 1), jnp.float32, -bound, bound)
        self.bias = jnp.zeros((), jnp.float32)

    def __call__(self, adjacency, input_feature, graph_indicator, graph_sizes):
        # 1) attention scores via GCN + tanh (Pallas kernel; adjacency may be bf16)
        attn_score = attention_scores(adjacency, input_feature, self.weight, self.bias)
        # 2) per-graph top-k (single global lexsort)
        keep_idx = top_rank_indices(attn_score, graph_indicator, graph_sizes,
                                    self.keep_ratio)
        # TODO(synk): hidden = X[keep]*score[keep] is a data-dependent gather + tiny
        # elementwise scale; left to fused XLA (a pallas_call at small K costs more
        # in launch/step overhead than this mem-bound math).
        hidden = input_feature[keep_idx] * attn_score[keep_idx][:, None]
        mask_graph_indicator = graph_indicator[keep_idx]
        # 4) pooled + renormalized adjacency (Pallas degree + scaling passes)
        mask_adjacency = filter_adjacency_pallas(adjacency, keep_idx)
        return hidden, mask_graph_indicator, mask_adjacency


# --------------------------------- main -------------------------------------

if __name__ == "__main__":
    key = jax.random.PRNGKey(0)
    k_w, k_x = jax.random.split(key, 2)

    # Small synthetic graph batch: 2 graphs of 8 nodes each, feature dim 8.
    graph_sizes = [8, 8]
    N = sum(graph_sizes)
    F = 8
    keep_ratio = 0.5

    graph_indicator = jnp.concatenate(
        [jnp.full((n,), i, dtype=jnp.int32) for i, n in enumerate(graph_sizes)])
    input_feature = jax.random.normal(k_x, (N, F), jnp.float32)

    # Block-diagonal random symmetric binary adjacency (no self loops), then
    # normalize L = D^-0.5 (A + I) D^-0.5 — this dense L is what forward() receives.
    rng = np.random.default_rng(0)
    A_np = np.zeros((N, N), dtype=np.float32)
    off = 0
    for n in graph_sizes:
        blk = (rng.random((n, n)) < 0.4).astype(np.float32)
        blk = np.maximum(blk, blk.T)
        np.fill_diagonal(blk, 0.0)
        A_np[off:off + n, off:off + n] = blk
        off += n
    A_hat_np = A_np + np.eye(N, dtype=np.float32)
    deg_np = A_hat_np.sum(axis=1)
    dis_np = np.power(deg_np, -0.5)
    adj_norm_np = (dis_np[:, None] * A_hat_np * dis_np[None, :]).astype(np.float32)

    # Cast the adjacency to bf16 at the producer: halves the dominant HBM stream of
    # the attention kernel (accumulation / scores stay f32; nonzero pattern for the
    # pooled-adjacency path is preserved exactly).
    adjacency = jnp.asarray(adj_norm_np).astype(jnp.bfloat16)

    module = SelfAttentionPoolingPallas(input_dim=F, keep_ratio=keep_ratio, key=k_w)

    # --- attention-score kernel vs f64 numpy reference (same bf16-quantized A) ---
    scores = jax.block_until_ready(
        attention_scores(adjacency, input_feature, module.weight, module.bias))
    A64 = np.asarray(adjacency.astype(jnp.float32)).astype(np.float64)
    sup64 = (np.asarray(input_feature).astype(np.float64)
             @ np.asarray(module.weight).astype(np.float64))
    scores_ref = np.tanh(A64 @ sup64 + float(module.bias))[:, 0]
    assert np.allclose(np.asarray(scores), scores_ref, rtol=1e-4, atol=1e-5)

    # --- full forward ---
    hidden, mask_gi, mask_adj = module(adjacency, input_feature, graph_indicator,
                                       graph_sizes)
    hidden = jax.block_until_ready(hidden)
    mask_gi = jax.block_until_ready(mask_gi)
    mask_adj = jax.block_until_ready(mask_adj)

    # --- numpy reference forward (per-graph loop = the torch semantics) ---
    s_np = np.asarray(scores)
    mask_np = np.zeros(N, dtype=bool)
    off = 0
    for n in graph_sizes:
        k = int(keep_ratio * n)
        seg = s_np[off:off + n]
        order_np = np.argsort(-seg, kind="stable")
        mask_np[off + order_np[:k]] = True
        off += n
    keep_ref = np.nonzero(mask_np)[0]
    K = keep_ref.size

    hidden_ref = np.asarray(input_feature)[keep_ref] * s_np[keep_ref][:, None]
    sub_ref = adj_norm_np[np.ix_(keep_ref, keep_ref)]
    ah_ref = (sub_ref != 0).astype(np.float64)
    d_ref = np.power(ah_ref.sum(axis=1), -0.5)
    adj_ref = d_ref[:, None] * ah_ref * d_ref[None, :]

    assert hidden.shape == (K, F)
    assert mask_gi.shape == (K,)
    assert mask_adj.shape == (K, K)
    assert bool(jnp.all(jnp.isfinite(hidden))) and bool(jnp.all(jnp.isfinite(mask_adj)))
    assert np.allclose(np.asarray(hidden), hidden_ref, rtol=1e-5, atol=1e-6)
    assert np.array_equal(np.asarray(mask_gi), np.asarray(graph_indicator)[keep_ref])
    assert np.allclose(np.asarray(mask_adj), adj_ref, rtol=1e-5, atol=1e-6)

    print("KERNEL_OK")
</pallas_src>

<mosaic_0001>
module attributes {stable_mosaic.version = 11 : i64} {
  func.func @kernel(%arg0: i32, %arg1: i32, %arg2: memref<8x128xbf16, #tpu.memory_space<vmem>>, %arg3: memref<1x128xf32, #tpu.memory_space<vmem>>, %arg4: memref<1x1xf32, #tpu.memory_space<smem>>, %arg5: memref<8x1xf32, #tpu.memory_space<vmem>>, %arg6: memref<8x128xf32, #tpu.memory_space<vmem>>) attributes {dimension_semantics = [#tpu.dimension_semantics<parallel>, #tpu.dimension_semantics<arbitrary>], iteration_bounds = array<i64: 2, 1>, scalar_prefetch = 0 : i64, scratch_operands = 1 : i64, tpu.core_type = #tpu.core_type<tc>, window_params = [{transform_indices = @transform_0, window_bounds = array<i64: 8, 128>}, {transform_indices = @transform_1, window_bounds = array<i64: 1, 128>}, {transform_indices = @transform_2, window_bounds = array<i64: 1, 1>}, {transform_indices = @transform_3, window_bounds = array<i64: 8, 1>}]} {
    %c0_i32 = arith.constant 0 : i32
    %0 = arith.cmpi eq, %arg1, %c0_i32 : i32
    %1 = arith.extui %0 : i1 to i32
    %c0_i32_0 = arith.constant 0 : i32
    %2 = arith.cmpi ne, %1, %c0_i32_0 : i32
    scf.if %2 {
      %cst_10 = arith.constant 0.000000e+00 : f32
      %24 = vector.broadcast %cst_10 : f32 to vector<8x128xf32>
      %c0_11 = arith.constant 0 : index
      %c0_12 = arith.constant 0 : index
      %25 = vector.load %arg6[%c0_11, %c0_12] : memref<8x128xf32, #tpu.memory_space<vmem>>, vector<8x128xf32>
      tpu.vector_store %arg6[%c0_11, %c0_12], %24 {strides = array<i32>} : memref<8x128xf32, #tpu.memory_space<vmem>>, vector<8x128xf32>,
    } else {
    }
    %c128_i32 = arith.constant 128 : i32
    %3 = arith.muli %arg1, %c128_i32 : i32
    %4 = tpu.iota {dimensions = array<i32: 1>} : vector<1x128xi32>
    %5 = vector.broadcast %3 : i32 to vector<1x128xi32>
    %6 = arith.addi %5, %4 : vector<1x128xi32>
    %c16_i32 = arith.constant 16 : i32
    %7 = vector.broadcast %c16_i32 : i32 to vector<1x128xi32>
    %8 = arith.cmpi slt, %6, %7 : vector<1x128xi32>
    %c0 = arith.constant 0 : index
    %c0_1 = arith.constant 0 : index
    %9 = vector.load %arg2[%c0, %c0_1] : memref<8x128xbf16, #tpu.memory_space<vmem>>, vector<8x128xbf16>
    %10 = arith.extf %9 : vector<8x128xbf16> to vector<8x128xf32>
    %c0_2 = arith.constant 0 : index
    %c0_3 = arith.constant 0 : index
    %11 = vector.load %arg3[%c0_2, %c0_3] : memref<1x128xf32, #tpu.memory_space<vmem>>, vector<1x128xf32>
    %12 = vector.broadcast %11 : vector<1x128xf32> to vector<8x128xf32>
    %13 = arith.mulf %10, %12 : vector<8x128xf32>
    %cst = arith.constant 0.000000e+00 : f32
    %14 = vector.shape_cast %8 : vector<1x128xi1> to vector<1x128xi1>
    %15 = vector.broadcast %14 : vector<1x128xi1> to vector<8x128xi1>
    %16 = vector.broadcast %cst : f32 to vector<8x128xf32>
    %17 = arith.select %15, %13, %16 : vector<8x128xi1>, vector<8x128xf32>
    %c0_4 = arith.constant 0 : index
    %c0_5 = arith.constant 0 : index
    %18 = vector.load %arg6[%c0_4, %c0_5] : memref<8x128xf32, #tpu.memory_space<vmem>>, vector<8x128xf32>
    %19 = arith.addf %18, %17 : vector<8x128xf32>
    %c0_6 = arith.constant 0 : index
    %c0_7 = arith.constant 0 : index
    %20 = vector.load %arg6[%c0_6, %c0_7] : memref<8x128xf32, #tpu.memory_space<vmem>>, vector<8x128xf32>
    tpu.vector_store %arg6[%c0_6, %c0_7], %19 {strides = array<i32>} : memref<8x128xf32, #tpu.memory_space<vmem>>, vector<8x128xf32>,
    %c0_i32_8 = arith.constant 0 : i32
    %21 = arith.cmpi eq, %arg1, %c0_i32_8 : i32
    %22 = arith.extui %21 : i1 to i32
    %c0_i32_9 = arith.constant 0 : i32
    %23 = arith.cmpi ne, %22, %c0_i32_9 : i32
    scf.if %23 {
      %c0_10 = arith.constant 0 : index
      %c0_11 = arith.constant 0 : index
      %24 = vector.load %arg6[%c0_10, %c0_11] : memref<8x128xf32, #tpu.memory_space<vmem>>, vector<8x128xf32>
      %cst_12 = arith.constant dense<0.000000e+00> : vector<8xf32>
      %25 = vector.multi_reduction <add>, %24, %cst_12 [1] : vector<8x128xf32> to vector<8xf32>
      %26 = vector.shape_cast %25 : vector<8xf32> to vector<8x1xf32>
      %c0_13 = arith.constant 0 : index
      %c0_14 = arith.constant 0 : index
      %27 = memref.load %arg4[%c0_13, %c0_14] : memref<1x1xf32, #tpu.memory_space<smem>>
      %28 = vector.broadcast %27 : f32 to vector<8x1xf32>
      %29 = arith.addf %26, %28 : vector<8x1xf32>
      %30 = math.tanh %29 : vector<8x1xf32>
      %c0_15 = arith.constant 0 : index
      %c0_16 = arith.constant 0 : index
      %31 = vector.load %arg5[%c0_15, %c0_16] : memref<8x1xf32, #tpu.memory_space<vmem>>, vector<8x1xf32>
      tpu.vector_store %arg5[%c0_15, %c0_16], %30 {strides = array<i32>} : memref<8x1xf32, #tpu.memory_space<vmem>>, vector<8x1xf32>,
    } else {
    }
    return
  }
  func.func @transform_0(%arg0: i32, %arg1: i32) -> (i32, i32) {
    %c0_i32 = arith.constant 0 : i32
    return %arg0, %arg1 : i32, i32
  }
  func.func @transform_1(%arg0: i32, %arg1: i32) -> (i32, i32) {
    %c0_i32 = arith.constant 0 : i32
    %c0_i32_0 = arith.constant 0 : i32
    return %c0_i32, %arg1 : i32, i32
  }
  func.func @transform_2(%arg0: i32, %arg1: i32) -> (i32, i32) {
    %c0_i32 = arith.constant 0 : i32
    %c0_i32_0 = arith.constant 0 : i32
    %c0_i32_1 = arith.constant 0 : i32
    return %c0_i32, %c0_i32_0 : i32, i32
  }
  func.func @transform_3(%arg0: i32, %arg1: i32) -> (i32, i32) {
    %c0_i32 = arith.constant 0 : i32
    %c0_i32_0 = arith.constant 0 : i32
    return %arg0, %c0_i32 : i32, i32
  }
}

</mosaic_0001>

<llo_original>
// kernel: tpu_custom_call.1
$region0: #{tpu_custom_call.1}
  #allocation0 [shape = 'u32[]', space=smem, size = 0x4, offset = 0x4, fixed_abs, tag = 'smem constant byte address 0x4 - core index']
  #allocation1 [shape = 'u32[72,128]{1,0:T(1,128)}', space=vmem, size = 0x9000, scoped, tag = 'internal scratch']
  #allocation2 [shape = 'f32[8,128]{1,0:T(8,128)}', space=vmem, size = 0x1000, scoped, tag = 'scratch operand']
  #allocation3 [shape = 'f32[1,1]{1,0:T(1,128)S(6)}', space=smem, size = 0x200, scoped, tag = 'scoped memory for tpu_custom_call.1']
  %s0 = inlined_call_operand.hbm [shape: bf16[16,16], index: 0, kind: input, shape index: {}]
  %s1 = inlined_call_operand.vmem [shape: f32[1,16], index: 1, kind: input, shape index: {}]
  %s2 = inlined_call_operand.<no memory space> [shape: f32[1,1], index: 2, kind: input, shape index: {}]
  %s3 = inlined_call_operand.vmem [shape: f32[16,1], index: 3, kind: output, shape index: {}]
  %s4 = sld [smem:[#allocation0]]
  $region57: #{tpu_custom_call.1} parent=0
    _
  %s6 = ssub.s32 1, %s4
  %s7 = scalar_select 0, %s6, %s4
  %8 = sst [smem:[#allocation3]] %s2
  $region1: #{tpu_custom_call.1} parent=0
    #allocation4 [shape = 'u8[4096]{0}', space=vmem, size = 0x1000, scoped, tag = 'input window, operand 0']
    #allocation5 [shape = 's32[2]{0}', space=sflag, size = 0x8, scoped, tag = 'scoped memory for tpu_custom_call.1']
    %9 = vsyncpa [#allocation5], 0
    %s10 = scalar_lea.sflag [#allocation5], 1
    %11 = vsyncpa %s10, 0
    loop: start=0, step=1, limit=4
    $region2: #{tpu_custom_call.1} parent=1 // loop_pre_header
      _
    $region3: #{tpu_custom_call.1} parent=1 // loop_header
      %s13 = sphi 0, %s17
      %p14 = scmp.ge.s32.totalorder %s13, 4
      %s20 = sphi 0, %s32
      %s21 = sphi 0, %s28
      %s22 = sphi 0, %s20
      %s23 = sphi 0, %s21
      %s24 = sphi 0, %s22
      %s25 = sphi 0, %s23
      %s37 = sphi 0, %s39
      %s40 = sphi 0, %s37
      %s41 = sphi 0, %s40
      %s57 = sphi 0, %s41
      %s63 = sphi 0, %s65
      %s66 = sphi 0, %s63
      %s67 = sphi 0, %s66
      %s83 = sphi 0, %s67
      %s87 = sphi 0, %s87
      %s89 = sphi 0, %s87
      %s90 = sphi 0, %s89
      %s104 = sphi 0, %s90
      %s110 = sphi 0, %s112
      %s113 = sphi 0, %s110
      %s114 = sphi 0, %s113
      %s130 = sphi 0, %s114
    $region4: #{tpu_custom_call.1} parent=1 // loop_header_branch
      %16 = sbr.rel (%p14) target = $region8
    $region5: #{tpu_custom_call.1} parent=1 // loop_body
      %s18 = ssub.s32 %s13, 1
      %s19 = ssub.s32 %s13, 2
      %s26 = sadd.s32 1, %s21
      %p27 = scmp.ge.s32.totalorder %s26, 1
      %s28 = scalar_select %p27, 0, %s26
      %s29 = sadd.s32 1, %s20
      %s30 = scalar_select %p27, %s29, %s20
      %p31 = scmp.ge.s32.totalorder %s30, 2
      %s32 = scalar_select %p31, 0, %s30
      %s33 = ssub.s32 %s20, %s32
      %s34 = ssub.s32 %s21, %s28
      %s35 = sor.u32 %s33, %s34
      %p36 = scmp.eq.s32.totalorder %s35, 0
      %s38 = sadd.s32 %s37, 1
      %s39 = scalar_select %p36, %s37, %s38
      %p42 = pneg %p36
      %p43 = scmp.eq.s32.totalorder %s13, 1
      %p44 = por %p42, %p43
      %p45 = scmp.ne.s32.totalorder %s37, %s40
      %p46 = scmp.eq.s32.totalorder %s13, 0
      %p47 = por %p45, %p46
      %p48 = scmp.ne.s32.totalorder %s37, %s40
      %p49 = scmp.eq.s32.totalorder %s18, 1
      %p50 = por %p48, %p49
      %p51 = scmp.ne.s32.totalorder %s40, %s41
      %p52 = scmp.eq.s32.totalorder %s18, 0
      %p53 = por %p51, %p52
      %p54 = scmp.ne.s32.totalorder %s40, %s41
      %p55 = scmp.eq.s32.totalorder %s19, 1
      %p56 = por %p54, %p55
      %p58 = scmp.ne.s32.totalorder %s41, %s57
      %p59 = scmp.eq.s32.totalorder %s19, 0
      %p60 = por %p58, %p59
      %s61 = ssub.s32 %s21, %s28
      %p62 = scmp.eq.s32.totalorder %s61, 0
      %s64 = sadd.s32 %s63, 1
      %s65 = scalar_select %p62, %s63, %s64
      %p68 = pneg %p62
      %p69 = scmp.eq.s32.totalorder %s13, 1
      %p70 = por %p68, %p69
      %p71 = scmp.ne.s32.totalorder %s63, %s66
      %p72 = scmp.eq.s32.totalorder %s13, 0
      %p73 = por %p71, %p72
      %p74 = scmp.ne.s32.totalorder %s63, %s66
      %p75 = scmp.eq.s32.totalorder %s18, 1
      %p76 = por %p74, %p75
      %p77 = scmp.ne.s32.totalorder %s66, %s67
      %p78 = scmp.eq.s32.totalorder %s18, 0
      %p79 = por %p77, %p78
      %p80 = scmp.ne.s32.totalorder %s66, %s67
      %p81 = scmp.eq.s32.totalorder %s19, 1
      %p82 = por %p80, %p81
      %p84 = scmp.ne.s32.totalorder %s67, %s83
      %p85 = scmp.eq.s32.totalorder %s19, 0
      %p86 = por %p84, %p85
      %s88 = sadd.s32 %s87, 1
      %p91 = scmp.eq.s32.totalorder %s13, 1
      %p92 = scmp.ne.s32.totalorder %s87, %s89
      %p93 = scmp.eq.s32.totalorder %s13, 0
      %p94 = por %p92, %p93
      %p95 = scmp.ne.s32.totalorder %s87, %s89
      %p96 = scmp.eq.s32.totalorder %s18, 1
      %p97 = por %p95, %p96
      %p98 = scmp.ne.s32.totalorder %s89, %s90
      %p99 = scmp.eq.s32.totalorder %s18, 0
      %p100 = por %p98, %p99
      %p101 = scmp.ne.s32.totalorder %s89, %s90
      %p102 = scmp.eq.s32.totalorder %s19, 1
      %p103 = por %p101, %p102
      %p105 = scmp.ne.s32.totalorder %s90, %s104
      %p106 = scmp.eq.s32.totalorder %s19, 0
      %p107 = por %p105, %p106
      %s108 = ssub.s32 %s20, %s32
      %p109 = scmp.eq.s32.totalorder %s108, 0
      %s111 = sadd.s32 %s110, 1
      %s112 = scalar_select %p109, %s110, %s111
      %p115 = pneg %p109
      %p116 = scmp.eq.s32.totalorder %s13, 1
      %p117 = por %p115, %p116
      %p118 = scmp.ne.s32.totalorder %s110, %s113
      %p119 = scmp.eq.s32.totalorder %s13, 0
      %p120 = por %p118, %p119
      %p121 = scmp.ne.s32.totalorder %s110, %s113
      %p122 = scmp.eq.s32.totalorder %s18, 1
      %p123 = por %p121, %p122
      %p124 = scmp.ne.s32.totalorder %s113, %s114
      %p125 = scmp.eq.s32.totalorder %s18, 0
      %p126 = por %p124, %p125
      %p127 = scmp.ne.s32.totalorder %s113, %s114
      %p128 = scmp.eq.s32.totalorder %s19, 1
      %p129 = por %p127, %p128
      %p131 = scmp.ne.s32.totalorder %s114, %s130
      %p132 = scmp.eq.s32.totalorder %s19, 0
      %p133 = por %p131, %p132
      %p134 = scmp.le.s32.totalorder 1, %s13
      %p135 = scmp.lt.s32.totalorder %s13, 3
      %p136 = pnand %p134, %p135
      %p137 = pneg %p136
      // Predicated region
      $region9: #{tpu_custom_call.1} parent=5 // pred_check
        _
      $region10: #{tpu_custom_call.1} parent=5 // pred_check_branch
        %139 = sbr.rel (%p136) target = $region12
      $region11: #{tpu_custom_call.1} parent=5 // pred_region
        %s140 = ssub.s32 %s13, 1
        // Predicated region
        $region13: #{tpu_custom_call.1} parent=11 // pred_check
          %p141 = pneg %p79
        $region14: #{tpu_custom_call.1} parent=11 // pred_check_branch
          %143 = sbr.rel (%p141) target = $region16
        $region15: #{tpu_custom_call.1} parent=11 // pred_region
          %p144 = scmp.lt.s32.totalorder %s23, 0
          %s145 = scalar_select %p144, %s23, 0
          %s146 = scalar_lea.vmem %s1, %s145
        $region16: #{tpu_custom_call.1} parent=11 // pred_fallthru
          _
        // Predicated region
        $region17: #{tpu_custom_call.1} parent=11 // pred_check
          %p147 = pneg %p100
        $region18: #{tpu_custom_call.1} parent=11 // pred_check_branch
          %149 = sbr.rel (%p147) target = $region20
        $region19: #{tpu_custom_call.1} parent=11 // pred_region
          _
        $region20: #{tpu_custom_call.1} parent=11 // pred_fallthru
          _
      $region12: #{tpu_custom_call.1} parent=5 // pred_fallthru
        _
      %p150 = scmp.lt.s32.totalorder %s13, 2
      // Predicated region
      $region21: #{tpu_custom_call.1} parent=5 // pred_check
        %p151 = pneg %p150
      $region22: #{tpu_custom_call.1} parent=5 // pred_check_branch
        %153 = sbr.rel (%p151) target = $region24
      $region23: #{tpu_custom_call.1} parent=5 // pred_region
        // Predicated region
        $region25: #{tpu_custom_call.1} parent=23 // pred_check
          %p154 = pneg %p47
        $region26: #{tpu_custom_call.1} parent=23 // pred_check_branch
          %156 = sbr.rel (%p154) target = $region28
        $region27: #{tpu_custom_call.1} parent=23 // pred_region
          %s157 = sand.u32 %s37, 1
          %s158 = scalar_lea.sflag [#allocation5], %s157
          %s159 = sand.u32 %s37, 1
          %s160 = smul.addr %s159, 4
          %s161 = scalar_lea.vmem [#allocation4], %s160
          %163 = vsyncadd %s158, 0
          %s164 = sadd.s32 %s21, %s20
          %s165 = smul.addr %s164, 4
          %s166 = scalar_lea.hbm %s0, %s165
          %s168 = sshll.u32 %s166, 4
          %s169 = int_to_ptr.hbm [resolvable:$true] %s168
          %s170 = sshll.u32 %s161, 4
          %s171 = int_to_ptr.vmem [resolvable:$true] %s170
          %173 = dma.hbm_to_vmem [thread:$0]  %s169, 64, %s171, %s158
        $region28: #{tpu_custom_call.1} parent=23 // pred_fallthru
          _
      $region24: #{tpu_custom_call.1} parent=5 // pred_fallthru
        _
      %p174 = scmp.le.s32.totalorder 1, %s13
      %p175 = scmp.lt.s32.totalorder %s13, 3
      %p176 = pnand %p174, %p175
      %p177 = pneg %p176
      // Predicated region
      $region29: #{tpu_custom_call.1} parent=5 // pred_check
        _
      $region30: #{tpu_custom_call.1} parent=5 // pred_check_branch
        %179 = sbr.rel (%p176) target = $region32
      $region31: #{tpu_custom_call.1} parent=5 // pred_region
        %s180 = ssub.s32 %s13, 1
        %s181 = sand.u32 %s40, 1
        %s182 = scalar_lea.sflag [#allocation5], %s181
        %s183 = sand.u32 %s40, 1
        %s184 = smul.addr %s183, 4
        %s185 = scalar_lea.vmem [#allocation4], %s184
        // Predicated region
        $region33: #{tpu_custom_call.1} parent=31 // pred_check
          %p186 = pneg %p53
        $region34: #{tpu_custom_call.1} parent=31 // pred_check_branch
          %188 = sbr.rel (%p186) target = $region36
        $region35: #{tpu_custom_call.1} parent=31 // pred_region
          %190 = dma.done %s182, 64
        $region36: #{tpu_custom_call.1} parent=31 // pred_fallthru
          _
        %s191 = sand.u32 %s40, 1
        %s192 = scalar_lea.sflag [#allocation5], %s191
        %s193 = sand.u32 %s40, 1
        %s194 = smul.addr %s193, 4
        %s195 = scalar_lea.vmem [#allocation4], %s194
        %p196 = pneg %p53
        %p197 = pneg %p50
        %p198 = scmp.lt.s32.totalorder %s23, 0
        %s199 = scalar_select %p198, %s23, 0
        %s200 = scalar_lea.vmem %s1, %s199
        %p201 = pneg %p79
        %p202 = pneg %p76
        %p203 = pneg %p100
        %p204 = pneg %p97
        %p205 = pneg %p126
        %p206 = pneg %p123
        %p207 = scmp.lt.s32.totalorder %s22, 1
        %s208 = scalar_select %p207, %s22, 1
        %s209 = smul.addr %s208, 8
        %s210 = scalar_lea.vmem %s3, %s209
        %p211 = scmp.lt.s32.totalorder %s23, 0
        %s212 = scalar_select %p211, %s23, 0
        %s213 = scalar_lea.vmem %s1, %s212
        %p214 = scmp.lt.s32.totalorder %s22, 1
        %s215 = scalar_select %p214, %s22, 1
        %s216 = smul.addr %s215, 8
        %s217 = scalar_lea.vmem %s3, %s216
        %p218 = scmp.eq.s32.totalorder %s23, 0
        // Predicated region
        $region37: #{tpu_custom_call.1} parent=31 // pred_check
          %p219 = pneg %p218
        $region38: #{tpu_custom_call.1} parent=31 // pred_check_branch
          %221 = sbr.rel (%p219) target = $region40
        $region39: #{tpu_custom_call.1} parent=31 // pred_region
          %222 = vst [vmem:[#allocation2] sm:$0xff] 0.0
        $region40: #{tpu_custom_call.1} parent=31 // pred_fallthru
          _
        %s223 = smul.u32 %s23, 128
        %v224 = vlaneseq
        %v225 = vand.u32 %v224, 127
        %v226 = vstv %s223
        %v227 = vadd.s32 %v226, %v225
        %vm228 = vcmp.lt.s32.totalorder %v227, 16
        %v229 = vld [vmem:[%s185] sm:$0xf]
        %v230 = vunpack.c.l.bf16 %v229
        %v231 = vld [vmem:[%s213] sm:$0x1]
        %v233 = vperm.slane %v231, 0
        %v235 = vmul.f32 %v230, %v233
        %v236 = vsel %vm228, 1, 0
        %vm237 = vcmp.eq.s32.totalorder %v236, 1
        %v238 = vsel %vm237, %v235, 0.0
        %v239 = vld [vmem:[#allocation2] sm:$0xff]
        %v240 = vadd.f32 %v239, %v238
        %241 = vst [vmem:[#allocation2] sm:$0xff] %v240
        // Predicated region
        $region41: #{tpu_custom_call.1} parent=31 // pred_check
          %p242 = pneg %p218
        $region42: #{tpu_custom_call.1} parent=31 // pred_check_branch
          %244 = sbr.rel (%p242) target = $region44
        $region43: #{tpu_custom_call.1} parent=31 // pred_region
          %v245 = vld [vmem:[#allocation2] sm:$0xff]
          %246 = vadd.xlane.f32.xlu0 %v245
          %v247 = vpop.xlane.xlu0 %246
          %s248 = sld [smem:[#allocation3]]
          %v249 = vstv %s248
          %v250 = vadd.f32 %v247, %v249
          %v251 = vtanh.pop %v250
          %vm252 = vcmask 7168
          %253 = vst.msk [vmem:[%s217] sm:$0xff] %vm252, %v251
        $region44: #{tpu_custom_call.1} parent=31 // pred_fallthru
          _
        %p254 = scmp.lt.s32.totalorder %s22, 1
        %s255 = scalar_select %p254, %s22, 1
        %s256 = smul.addr %s255, 8
        %s257 = scalar_lea.vmem %s3, %s256
        // Predicated region
        $region45: #{tpu_custom_call.1} parent=31 // pred_check
          %p258 = pneg %p123
        $region46: #{tpu_custom_call.1} parent=31 // pred_check_branch
          %260 = sbr.rel (%p258) target = $region48
        $region47: #{tpu_custom_call.1} parent=31 // pred_region
          _
        $region48: #{tpu_custom_call.1} parent=31 // pred_fallthru
          _
      $region32: #{tpu_custom_call.1} parent=5 // pred_fallthru
        _
      %p261 = scmp.le.s32.totalorder 2, %s13
      // Predicated region
      $region49: #{tpu_custom_call.1} parent=5 // pred_check
        %p262 = pneg %p261
      $region50: #{tpu_custom_call.1} parent=5 // pred_check_branch
        %264 = sbr.rel (%p262) target = $region52
      $region51: #{tpu_custom_call.1} parent=5 // pred_region
        %s265 = ssub.s32 %s13, 2
        // Predicated region
        $region53: #{tpu_custom_call.1} parent=51 // pred_check
          %p266 = pneg %p129
        $region54: #{tpu_custom_call.1} parent=51 // pred_check_branch
          %268 = sbr.rel (%p266) target = $region56
        $region55: #{tpu_custom_call.1} parent=51 // pred_region
          %p269 = scmp.lt.s32.totalorder %s24, 1
          %s270 = scalar_select %p269, %s24, 1
          %s271 = smul.addr %s270, 8
          %s272 = scalar_lea.vmem %s3, %s271
        $region56: #{tpu_custom_call.1} parent=51 // pred_fallthru
          _
      $region52: #{tpu_custom_call.1} parent=5 // pred_fallthru
        _
    $region6: #{tpu_custom_call.1} parent=1 // loop_footer
      %s17 = sadd.s32 1, %s13
    $region7: #{tpu_custom_call.1} parent=1 // loop_footer_branch
      %12 = sbr.rel target = $region3
    $region8: #{tpu_custom_call.1} parent=1 // loop_exit
      _
    %273 = vsyncpa [#allocation5], 1
    %s274 = scalar_lea.sflag [#allocation5], 1
    %275 = vsyncpa %s274, 1

</llo_original>
